<compile_context>
chip_gen: v7x
topology: tpu7x:2x2x1
jax: 0.10.0
libtpu: 0.0.40
codegen_flags: <defaults>
</compile_context>

<pallas_src>
import numpy as np
import jax
import jax.numpy as jnp
from jax import lax
from jax.experimental import pallas as pl
from jax.experimental.pallas import tpu as pltpu

_LANES = 128
_TILE_GRANULE = 8 * _LANES   # 1024 rows: keeps (sublane, lane) block dims (8,128)-aligned
_NUM_TC_HINT = 2             # v7x has 2 TensorCores/chip; harmless on 1-TC chips


def _cdiv(a, b):
    return -(-a // b)


def _round_up(x, m):
    return _cdiv(x, m) * m


# ---------------------------------------------------------------------------
# Pure-JAX reference (mirrors the torch forward, n_input == 2 path). Also used
# as the small-batch escape hatch where kernel-launch overhead would dominate.
# ---------------------------------------------------------------------------
def _c_l_pol_reference(cols, pss, pos, gs, gr, max_order, min_power):
    r = cols[:, 0:2]
    s = cols[:, 2:4]
    a_s = gs * s**2 / (1.0 + gs * s**2)                        # (N, 2)
    a_r = gr * r**2 / (1.0 + gr * r**2)                        # (N, 2)
    os_s = (cols[:, 3:4]**2 + cols[:, 2:3]**2) * 0.5           # (N, 1)
    os_r = (cols[:, 0:1]**2 + cols[:, 1:2]**2) * 0.5           # (N, 1)
    b_s = gs * os_s / (1.0 + gs * os_s)
    b_r = gr * os_r / (1.0 + gr * os_r)
    feats_ss = jnp.stack([a_s**i * a_r**j
                          for i in range(min_power, max_order + 1)
                          for j in range(max_order + 1)], axis=-1)        # (N, 2, F)
    feats_os = jnp.concatenate([b_s**i * b_r**j
                                for i in range(min_power, max_order + 1)
                                for j in range(max_order + 1)], axis=-1)  # (N, F)
    e_ss = jnp.einsum('i,...i->...', pss, feats_ss)            # (N, 2)
    e_os = jnp.einsum('i,...i->...', pos, feats_os)[..., None]  # (N, 1)
    return -jnp.concatenate([e_ss, e_os], axis=-1)             # (N, 3)


# ---------------------------------------------------------------------------
# Pallas kernel: per (4, S, 128) tile -> (3, S, 128) tile, pure VPU + EUP.
# ---------------------------------------------------------------------------
def _make_clpol_kernel(max_order, min_power):
    nj = max_order + 1

    def poly2d(coef_ref, f_s, f_r):
        # sum_{i=min_power..M} sum_{j=0..M} coef[(i-min_power)*nj + j] * f_s^i * f_r^j
        # via nested Horner (inner over f_r, outer over f_s, f_s^min_power factored out).
        def inner(i):
            base = (i - min_power) * nj
            acc = coef_ref[base + max_order]           # scalar from SMEM
            for j in range(max_order - 1, -1, -1):
                acc = acc * f_r + coef_ref[base + j]
            return acc
        acc = inner(max_order)
        for i in range(max_order - 1, min_power - 1, -1):
            acc = acc * f_s + inner(i)
        for _ in range(min_power):
            acc = acc * f_s
        return acc

    def kernel(pss_ref, pos_ref, gam_ref, x_ref, o_ref):
        # pss_ref/pos_ref: (n_free,) f32 SMEM (already normalized)
        # gam_ref: (2,) f32 SMEM = [|gamma_s|, |gamma_rho|]
        # x_ref: (4, S, 128) f32 VMEM, channels = [rho_a, rho_b, s_a, s_b]
        gs = gam_ref[0]
        gr = gam_ref[1]

        r = x_ref[0:2]                     # (2, S, 128)
        s = x_ref[2:4]                     # (2, S, 128)
        r2 = r * r
        s2 = s * s

        # same-spin saturation features, both spins at once (dense sublanes)
        gss = gs * s2
        grr = gr * r2
        a_s = gss * pl.reciprocal(1.0 + gss, approx=False)   # EUP slot
        a_r = grr * pl.reciprocal(1.0 + grr, approx=False)

        # opposite-spin features: (1, S, 128)
        os_s = (s2[0:1] + s2[1:2]) * 0.5
        os_r = (r2[0:1] + r2[1:2]) * 0.5
        gbs = gs * os_s
        gbr = gr * os_r
        b_s = gbs * pl.reciprocal(1.0 + gbs, approx=False)
        b_r = gbr * pl.reciprocal(1.0 + gbr, approx=False)

        e_ss = poly2d(pss_ref, a_s, a_r)   # (2, S, 128)
        e_os = poly2d(pos_ref, b_s, b_r)   # (1, S, 128)

        o_ref[0:2] = (-e_ss).astype(o_ref.dtype)
        o_ref[2:3] = (-e_os).astype(o_ref.dtype)

    return kernel


# ---------------------------------------------------------------------------
# Wrapper: fused layout plumbing + tiled pallas_call.
# ---------------------------------------------------------------------------
def c_l_pol_forward(rho, pars_ss, pars_os, gamma_s, gamma_rho, *,
                    use, max_order=4, ueg_limit=True,
                    block_cols=131072, min_pallas_rows=1024):
    """rho: (N, D) -> (N, 3) = -[e_ss_a, e_ss_b, e_os]."""
    use = tuple(int(u) for u in use)
    n_input = len(use) // 2
    assert n_input == 2, "only the n_input == 2 (4-descriptor) path is implemented"
    min_power = 1 if ueg_limit else 0
    n_free = ((max_order + 1) ** (n_input - 1) * max_order if ueg_limit
              else (max_order + 1) ** n_input)
    assert pars_ss.shape == (n_free,) and pars_os.shape == (n_free,)

    N = rho.shape[0]
    out_dtype = rho.dtype

    # Tiny parameter preprocessing in plain JAX (matches torch forward).
    pss = (pars_ss / jnp.sum(pars_ss)).astype(jnp.float32)
    pos = (pars_os / jnp.sum(pars_os)).astype(jnp.float32)
    gam = jnp.stack([jnp.abs(jnp.asarray(gamma_s)).reshape(()),
                     jnp.abs(jnp.asarray(gamma_rho)).reshape(())]).astype(jnp.float32)

    # Column selection: static slice when `use` is contiguous (no gather pass).
    contiguous = all(use[t] == use[0] + t for t in range(len(use)))
    if contiguous:
        cols = lax.slice_in_dim(rho, use[0], use[0] + len(use), axis=1)
    else:
        cols = jnp.take(rho, jnp.asarray(use, dtype=jnp.int32), axis=1)

    # Small-batch escape hatch: XLA fusion beats kernel launch + grid overhead.
    if N < min_pallas_rows:
        return _c_l_pol_reference(cols.astype(jnp.float32), pss, pos,
                                  gam[0], gam[1], max_order,
                                  min_power).astype(out_dtype)

    # Tile sizing: >= 2*num_TC grid steps (keeps both v7x cores busy), tile a
    # multiple of 1024 rows so the (sublane, lane) block dims are (8,128)-dense.
    n_steps = max(2 * _NUM_TC_HINT, _cdiv(N, max(block_cols, _TILE_GRANULE)))
    tb = _round_up(_cdiv(N, n_steps), _TILE_GRANULE)
    n_steps = max(2 * _NUM_TC_HINT, _cdiv(N, tb))
    n_pad = tb * n_steps
    sub = tb // _LANES                     # sublane-block extent, multiple of 8

    # Single fused layout pass: cast + pad + transpose + reshape so the batch
    # axis is lane-dense and all 8 sublanes per vreg are live. Zero padding is
    # numerically safe (denominators are 1 + x^2) and is sliced off anyway.
    x3 = jnp.pad(cols.astype(jnp.float32),
                 ((0, n_pad - N), (0, 0))).T.reshape(4, n_pad // _LANES, _LANES)

    kernel = _make_clpol_kernel(max_order, min_power)

    out3 = pl.pallas_call(
        kernel,
        out_shape=jax.ShapeDtypeStruct((3, n_pad // _LANES, _LANES), out_dtype),
        grid=(n_steps,),
        in_specs=[
            pl.BlockSpec(memory_space=pltpu.MemorySpace.SMEM),   # pars_ss (normalized)
            pl.BlockSpec(memory_space=pltpu.MemorySpace.SMEM),   # pars_os (normalized)
            pl.BlockSpec(memory_space=pltpu.MemorySpace.SMEM),   # [|gamma_s|, |gamma_rho|]
            pl.BlockSpec((4, sub, _LANES), lambda i: (0, i, 0)),  # x tile, lane/sublane-dense
        ],
        out_specs=pl.BlockSpec((3, sub, _LANES), lambda i: (0, i, 0)),
        compiler_params=pltpu.CompilerParams(
            dimension_semantics=("parallel",),   # shard batch grid across TCs (v7x)
        ),
    )(pss, pos, gam, x3)

    # Cast already happened at the in-kernel store; one reshape+slice+transpose.
    return out3.reshape(3, n_pad)[:, :N].T     # (N, 3)


if __name__ == "__main__":
    max_order = 4
    ueg_limit = True
    min_power = 1
    use = (0, 1, 2, 3)
    n_free = (max_order + 1) * max_order       # 20 free parameters

    key = jax.random.PRNGKey(0)

    # Module parameters (torch inits to 0.1 / 0.02; use deterministic,
    # non-uniform values so any term-ordering bug would be detected).
    pars_ss = 0.1 + 0.01 * jnp.arange(n_free, dtype=jnp.float32)
    pars_os = 0.1 + 0.005 * jnp.arange(n_free, dtype=jnp.float32)
    gamma_s = jnp.float32(0.02)
    gamma_rho = jnp.float32(0.05)

    # Small descriptor grid, non-multiple-of-1024 rows to exercise the padded
    # multi-block tiled path. Columns: [rho_a, rho_b, s_a, s_b, extra, extra].
    n_rows, n_cols = 200, 6
    rho = jax.random.normal(key, (n_rows, n_cols), dtype=jnp.float32)

    out = c_l_pol_forward(rho, pars_ss, pars_os, gamma_s, gamma_rho,
                          use=use, max_order=max_order, ueg_limit=ueg_limit,
                          block_cols=1024,           # small tile -> 4-step grid at N=200
                          min_pallas_rows=0)         # force the Pallas path
    out = jax.block_until_ready(out)
    assert out.shape == (n_rows, 3)

    # Pure-JAX reference mirroring the torch forward exactly.
    pss_n = pars_ss / jnp.sum(pars_ss)
    pos_n = pars_os / jnp.sum(pars_os)
    cols = rho[:, :4]
    ref = _c_l_pol_reference(cols, pss_n, pos_n,
                             jnp.abs(gamma_s), jnp.abs(gamma_rho),
                             max_order, min_power)
    np.testing.assert_allclose(np.asarray(out), np.asarray(ref),
                               rtol=1e-5, atol=1e-6)

    print("KERNEL_OK")
</pallas_src>

<mosaic_0001>
module attributes {stable_mosaic.version = 11 : i64} {
  func.func @kernel(%arg0: i32, %arg1: memref<20xf32, #tpu.memory_space<smem>>, %arg2: memref<20xf32, #tpu.memory_space<smem>>, %arg3: memref<2xf32, #tpu.memory_space<smem>>, %arg4: memref<4x8x128xf32, #tpu.memory_space<vmem>>, %arg5: memref<3x8x128xf32, #tpu.memory_space<vmem>>) attributes {dimension_semantics = [#tpu.dimension_semantics<parallel>], iteration_bounds = array<i64: 4>, scalar_prefetch = 0 : i64, scratch_operands = 0 : i64, tpu.core_type = #tpu.core_type<tc>, window_params = [{transform_indices = @transform_0, window_bounds = array<i64: 20>}, {transform_indices = @transform_1, window_bounds = array<i64: 20>}, {transform_indices = @transform_2, window_bounds = array<i64: 2>}, {transform_indices = @transform_3, window_bounds = array<i64: 4, 8, 128>}, {transform_indices = @transform_4, window_bounds = array<i64: 3, 8, 128>}]} {
    %c0 = arith.constant 0 : index
    %0 = memref.load %arg3[%c0] : memref<2xf32, #tpu.memory_space<smem>>
    %c1 = arith.constant 1 : index
    %1 = memref.load %arg3[%c1] : memref<2xf32, #tpu.memory_space<smem>>
    %c0_0 = arith.constant 0 : index
    %c0_1 = arith.constant 0 : index
    %c0_2 = arith.constant 0 : index
    %2 = vector.load %arg4[%c0_0, %c0_1, %c0_2] : memref<4x8x128xf32, #tpu.memory_space<vmem>>, vector<2x8x128xf32>
    %c2 = arith.constant 2 : index
    %c0_3 = arith.constant 0 : index
    %c0_4 = arith.constant 0 : index
    %3 = vector.load %arg4[%c2, %c0_3, %c0_4] : memref<4x8x128xf32, #tpu.memory_space<vmem>>, vector<2x8x128xf32>
    %4 = arith.mulf %2, %2 : vector<2x8x128xf32>
    %5 = arith.mulf %3, %3 : vector<2x8x128xf32>
    %6 = vector.broadcast %0 : f32 to vector<2x8x128xf32>
    %7 = arith.mulf %6, %5 : vector<2x8x128xf32>
    %8 = vector.broadcast %1 : f32 to vector<2x8x128xf32>
    %9 = arith.mulf %8, %4 : vector<2x8x128xf32>
    %cst = arith.constant 1.000000e+00 : f32
    %10 = vector.broadcast %cst : f32 to vector<2x8x128xf32>
    %11 = arith.addf %10, %7 : vector<2x8x128xf32>
    %12 = tpu.reciprocal %11 : vector<2x8x128xf32> -> vector<2x8x128xf32>
    %13 = arith.mulf %7, %12 : vector<2x8x128xf32>
    %cst_5 = arith.constant 1.000000e+00 : f32
    %14 = vector.broadcast %cst_5 : f32 to vector<2x8x128xf32>
    %15 = arith.addf %14, %9 : vector<2x8x128xf32>
    %16 = tpu.reciprocal %15 : vector<2x8x128xf32> -> vector<2x8x128xf32>
    %17 = arith.mulf %9, %16 : vector<2x8x128xf32>
    %18 = vector.extract_strided_slice %5 {offsets = [0, 0, 0], sizes = [1, 8, 128], strides = [1, 1, 1]} : vector<2x8x128xf32> to vector<1x8x128xf32>
    %19 = vector.extract_strided_slice %5 {offsets = [1, 0, 0], sizes = [1, 8, 128], strides = [1, 1, 1]} : vector<2x8x128xf32> to vector<1x8x128xf32>
    %20 = arith.addf %18, %19 : vector<1x8x128xf32>
    %cst_6 = arith.constant 5.000000e-01 : f32
    %21 = vector.broadcast %cst_6 : f32 to vector<1x8x128xf32>
    %22 = arith.mulf %20, %21 : vector<1x8x128xf32>
    %23 = vector.extract_strided_slice %4 {offsets = [0, 0, 0], sizes = [1, 8, 128], strides = [1, 1, 1]} : vector<2x8x128xf32> to vector<1x8x128xf32>
    %24 = vector.extract_strided_slice %4 {offsets = [1, 0, 0], sizes = [1, 8, 128], strides = [1, 1, 1]} : vector<2x8x128xf32> to vector<1x8x128xf32>
    %25 = arith.addf %23, %24 : vector<1x8x128xf32>
    %cst_7 = arith.constant 5.000000e-01 : f32
    %26 = vector.broadcast %cst_7 : f32 to vector<1x8x128xf32>
    %27 = arith.mulf %25, %26 : vector<1x8x128xf32>
    %28 = vector.broadcast %0 : f32 to vector<1x8x128xf32>
    %29 = arith.mulf %28, %22 : vector<1x8x128xf32>
    %30 = vector.broadcast %1 : f32 to vector<1x8x128xf32>
    %31 = arith.mulf %30, %27 : vector<1x8x128xf32>
    %cst_8 = arith.constant 1.000000e+00 : f32
    %32 = vector.broadcast %cst_8 : f32 to vector<1x8x128xf32>
    %33 = arith.addf %32, %29 : vector<1x8x128xf32>
    %34 = tpu.reciprocal %33 : vector<1x8x128xf32> -> vector<1x8x128xf32>
    %35 = arith.mulf %29, %34 : vector<1x8x128xf32>
    %cst_9 = arith.constant 1.000000e+00 : f32
    %36 = vector.broadcast %cst_9 : f32 to vector<1x8x128xf32>
    %37 = arith.addf %36, %31 : vector<1x8x128xf32>
    %38 = tpu.reciprocal %37 : vector<1x8x128xf32> -> vector<1x8x128xf32>
    %39 = arith.mulf %31, %38 : vector<1x8x128xf32>
    %c19 = arith.constant 19 : index
    %40 = memref.load %arg1[%c19] : memref<20xf32, #tpu.memory_space<smem>>
    %41 = vector.broadcast %40 : f32 to vector<2x8x128xf32>
    %42 = arith.mulf %41, %17 : vector<2x8x128xf32>
    %c18 = arith.constant 18 : index
    %43 = memref.load %arg1[%c18] : memref<20xf32, #tpu.memory_space<smem>>
    %44 = vector.broadcast %43 : f32 to vector<2x8x128xf32>
    %45 = arith.addf %42, %44 : vector<2x8x128xf32>
    %46 = arith.mulf %45, %17 : vector<2x8x128xf32>
    %c17 = arith.constant 17 : index
    %47 = memref.load %arg1[%c17] : memref<20xf32, #tpu.memory_space<smem>>
    %48 = vector.broadcast %47 : f32 to vector<2x8x128xf32>
    %49 = arith.addf %46, %48 : vector<2x8x128xf32>
    %50 = arith.mulf %49, %17 : vector<2x8x128xf32>
    %c16 = arith.constant 16 : index
    %51 = memref.load %arg1[%c16] : memref<20xf32, #tpu.memory_space<smem>>
    %52 = vector.broadcast %51 : f32 to vector<2x8x128xf32>
    %53 = arith.addf %50, %52 : vector<2x8x128xf32>
    %54 = arith.mulf %53, %17 : vector<2x8x128xf32>
    %c15 = arith.constant 15 : index
    %55 = memref.load %arg1[%c15] : memref<20xf32, #tpu.memory_space<smem>>
    %56 = vector.broadcast %55 : f32 to vector<2x8x128xf32>
    %57 = arith.addf %54, %56 : vector<2x8x128xf32>
    %58 = arith.mulf %57, %13 : vector<2x8x128xf32>
    %c14 = arith.constant 14 : index
    %59 = memref.load %arg1[%c14] : memref<20xf32, #tpu.memory_space<smem>>
    %60 = vector.broadcast %59 : f32 to vector<2x8x128xf32>
    %61 = arith.mulf %60, %17 : vector<2x8x128xf32>
    %c13 = arith.constant 13 : index
    %62 = memref.load %arg1[%c13] : memref<20xf32, #tpu.memory_space<smem>>
    %63 = vector.broadcast %62 : f32 to vector<2x8x128xf32>
    %64 = arith.addf %61, %63 : vector<2x8x128xf32>
    %65 = arith.mulf %64, %17 : vector<2x8x128xf32>
    %c12 = arith.constant 12 : index
    %66 = memref.load %arg1[%c12] : memref<20xf32, #tpu.memory_space<smem>>
    %67 = vector.broadcast %66 : f32 to vector<2x8x128xf32>
    %68 = arith.addf %65, %67 : vector<2x8x128xf32>
    %69 = arith.mulf %68, %17 : vector<2x8x128xf32>
    %c11 = arith.constant 11 : index
    %70 = memref.load %arg1[%c11] : memref<20xf32, #tpu.memory_space<smem>>
    %71 = vector.broadcast %70 : f32 to vector<2x8x128xf32>
    %72 = arith.addf %69, %71 : vector<2x8x128xf32>
    %73 = arith.mulf %72, %17 : vector<2x8x128xf32>
    %c10 = arith.constant 10 : index
    %74 = memref.load %arg1[%c10] : memref<20xf32, #tpu.memory_space<smem>>
    %75 = vector.broadcast %74 : f32 to vector<2x8x128xf32>
    %76 = arith.addf %73, %75 : vector<2x8x128xf32>
    %77 = arith.addf %58, %76 : vector<2x8x128xf32>
    %78 = arith.mulf %77, %13 : vector<2x8x128xf32>
    %c9 = arith.constant 9 : index
    %79 = memref.load %arg1[%c9] : memref<20xf32, #tpu.memory_space<smem>>
    %80 = vector.broadcast %79 : f32 to vector<2x8x128xf32>
    %81 = arith.mulf %80, %17 : vector<2x8x128xf32>
    %c8 = arith.constant 8 : index
    %82 = memref.load %arg1[%c8] : memref<20xf32, #tpu.memory_space<smem>>
    %83 = vector.broadcast %82 : f32 to vector<2x8x128xf32>
    %84 = arith.addf %81, %83 : vector<2x8x128xf32>
    %85 = arith.mulf %84, %17 : vector<2x8x128xf32>
    %c7 = arith.constant 7 : index
    %86 = memref.load %arg1[%c7] : memref<20xf32, #tpu.memory_space<smem>>
    %87 = vector.broadcast %86 : f32 to vector<2x8x128xf32>
    %88 = arith.addf %85, %87 : vector<2x8x128xf32>
    %89 = arith.mulf %88, %17 : vector<2x8x128xf32>
    %c6 = arith.constant 6 : index
    %90 = memref.load %arg1[%c6] : memref<20xf32, #tpu.memory_space<smem>>
    %91 = vector.broadcast %90 : f32 to vector<2x8x128xf32>
    %92 = arith.addf %89, %91 : vector<2x8x128xf32>
    %93 = arith.mulf %92, %17 : vector<2x8x128xf32>
    %c5 = arith.constant 5 : index
    %94 = memref.load %arg1[%c5] : memref<20xf32, #tpu.memory_space<smem>>
    %95 = vector.broadcast %94 : f32 to vector<2x8x128xf32>
    %96 = arith.addf %93, %95 : vector<2x8x128xf32>
    %97 = arith.addf %78, %96 : vector<2x8x128xf32>
    %98 = arith.mulf %97, %13 : vector<2x8x128xf32>
    %c4 = arith.constant 4 : index
    %99 = memref.load %arg1[%c4] : memref<20xf32, #tpu.memory_space<smem>>
    %100 = vector.broadcast %99 : f32 to vector<2x8x128xf32>
    %101 = arith.mulf %100, %17 : vector<2x8x128xf32>
    %c3 = arith.constant 3 : index
    %102 = memref.load %arg1[%c3] : memref<20xf32, #tpu.memory_space<smem>>
    %103 = vector.broadcast %102 : f32 to vector<2x8x128xf32>
    %104 = arith.addf %101, %103 : vector<2x8x128xf32>
    %105 = arith.mulf %104, %17 : vector<2x8x128xf32>
    %c2_10 = arith.constant 2 : index
    %106 = memref.load %arg1[%c2_10] : memref<20xf32, #tpu.memory_space<smem>>
    %107 = vector.broadcast %106 : f32 to vector<2x8x128xf32>
    %108 = arith.addf %105, %107 : vector<2x8x128xf32>
    %109 = arith.mulf %108, %17 : vector<2x8x128xf32>
    %c1_11 = arith.constant 1 : index
    %110 = memref.load %arg1[%c1_11] : memref<20xf32, #tpu.memory_space<smem>>
    %111 = vector.broadcast %110 : f32 to vector<2x8x128xf32>
    %112 = arith.addf %109, %111 : vector<2x8x128xf32>
    %113 = arith.mulf %112, %17 : vector<2x8x128xf32>
    %c0_12 = arith.constant 0 : index
    %114 = memref.load %arg1[%c0_12] : memref<20xf32, #tpu.memory_space<smem>>
    %115 = vector.broadcast %114 : f32 to vector<2x8x128xf32>
    %116 = arith.addf %113, %115 : vector<2x8x128xf32>
    %117 = arith.addf %98, %116 : vector<2x8x128xf32>
    %118 = arith.mulf %117, %13 : vector<2x8x128xf32>
    %c19_13 = arith.constant 19 : index
    %119 = memref.load %arg2[%c19_13] : memref<20xf32, #tpu.memory_space<smem>>
    %120 = vector.broadcast %119 : f32 to vector<1x8x128xf32>
    %121 = arith.mulf %120, %39 : vector<1x8x128xf32>
    %c18_14 = arith.constant 18 : index
    %122 = memref.load %arg2[%c18_14] : memref<20xf32, #tpu.memory_space<smem>>
    %123 = vector.broadcast %122 : f32 to vector<1x8x128xf32>
    %124 = arith.addf %121, %123 : vector<1x8x128xf32>
    %125 = arith.mulf %124, %39 : vector<1x8x128xf32>
    %c17_15 = arith.constant 17 : index
    %126 = memref.load %arg2[%c17_15] : memref<20xf32, #tpu.memory_space<smem>>
    %127 = vector.broadcast %126 : f32 to vector<1x8x128xf32>
    %128 = arith.addf %125, %127 : vector<1x8x128xf32>
    %129 = arith.mulf %128, %39 : vector<1x8x128xf32>
    %c16_16 = arith.constant 16 : index
    %130 = memref.load %arg2[%c16_16] : memref<20xf32, #tpu.memory_space<smem>>
    %131 = vector.broadcast %130 : f32 to vector<1x8x128xf32>
    %132 = arith.addf %129, %131 : vector<1x8x128xf32>
    %133 = arith.mulf %132, %39 : vector<1x8x128xf32>
    %c15_17 = arith.constant 15 : index
    %134 = memref.load %arg2[%c15_17] : memref<20xf32, #tpu.memory_space<smem>>
    %135 = vector.broadcast %134 : f32 to vector<1x8x128xf32>
    %136 = arith.addf %133, %135 : vector<1x8x128xf32>
    %137 = arith.mulf %136, %35 : vector<1x8x128xf32>
    %c14_18 = arith.constant 14 : index
    %138 = memref.load %arg2[%c14_18] : memref<20xf32, #tpu.memory_space<smem>>
    %139 = vector.broadcast %138 : f32 to vector<1x8x128xf32>
    %140 = arith.mulf %139, %39 : vector<1x8x128xf32>
    %c13_19 = arith.constant 13 : index
    %141 = memref.load %arg2[%c13_19] : memref<20xf32, #tpu.memory_space<smem>>
    %142 = vector.broadcast %141 : f32 to vector<1x8x128xf32>
    %143 = arith.addf %140, %142 : vector<1x8x128xf32>
    %144 = arith.mulf %143, %39 : vector<1x8x128xf32>
    %c12_20 = arith.constant 12 : index
    %145 = memref.load %arg2[%c12_20] : memref<20xf32, #tpu.memory_space<smem>>
    %146 = vector.broadcast %145 : f32 to vector<1x8x128xf32>
    %147 = arith.addf %144, %146 : vector<1x8x128xf32>
    %148 = arith.mulf %147, %39 : vector<1x8x128xf32>
    %c11_21 = arith.constant 11 : index
    %149 = memref.load %arg2[%c11_21] : memref<20xf32, #tpu.memory_space<smem>>
    %150 = vector.broadcast %149 : f32 to vector<1x8x128xf32>
    %151 = arith.addf %148, %150 : vector<1x8x128xf32>
    %152 = arith.mulf %151, %39 : vector<1x8x128xf32>
    %c10_22 = arith.constant 10 : index
    %153 = memref.load %arg2[%c10_22] : memref<20xf32, #tpu.memory_space<smem>>
    %154 = vector.broadcast %153 : f32 to vector<1x8x128xf32>
    %155 = arith.addf %152, %154 : vector<1x8x128xf32>
    %156 = arith.addf %137, %155 : vector<1x8x128xf32>
    %157 = arith.mulf %156, %35 : vector<1x8x128xf32>
    %c9_23 = arith.constant 9 : index
    %158 = memref.load %arg2[%c9_23] : memref<20xf32, #tpu.memory_space<smem>>
    %159 = vector.broadcast %158 : f32 to vector<1x8x128xf32>
    %160 = arith.mulf %159, %39 : vector<1x8x128xf32>
    %c8_24 = arith.constant 8 : index
    %161 = memref.load %arg2[%c8_24] : memref<20xf32, #tpu.memory_space<smem>>
    %162 = vector.broadcast %161 : f32 to vector<1x8x128xf32>
    %163 = arith.addf %160, %162 : vector<1x8x128xf32>
    %164 = arith.mulf %163, %39 : vector<1x8x128xf32>
    %c7_25 = arith.constant 7 : index
    %165 = memref.load %arg2[%c7_25] : memref<20xf32, #tpu.memory_space<smem>>
    %166 = vector.broadcast %165 : f32 to vector<1x8x128xf32>
    %167 = arith.addf %164, %166 : vector<1x8x128xf32>
    %168 = arith.mulf %167, %39 : vector<1x8x128xf32>
    %c6_26 = arith.constant 6 : index
    %169 = memref.load %arg2[%c6_26] : memref<20xf32, #tpu.memory_space<smem>>
    %170 = vector.broadcast %169 : f32 to vector<1x8x128xf32>
    %171 = arith.addf %168, %170 : vector<1x8x128xf32>
    %172 = arith.mulf %171, %39 : vector<1x8x128xf32>
    %c5_27 = arith.constant 5 : index
    %173 = memref.load %arg2[%c5_27] : memref<20xf32, #tpu.memory_space<smem>>
    %174 = vector.broadcast %173 : f32 to vector<1x8x128xf32>
    %175 = arith.addf %172, %174 : vector<1x8x128xf32>
    %176 = arith.addf %157, %175 : vector<1x8x128xf32>
    %177 = arith.mulf %176, %35 : vector<1x8x128xf32>
    %c4_28 = arith.constant 4 : index
    %178 = memref.load %arg2[%c4_28] : memref<20xf32, #tpu.memory_space<smem>>
    %179 = vector.broadcast %178 : f32 to vector<1x8x128xf32>
    %180 = arith.mulf %179, %39 : vector<1x8x128xf32>
    %c3_29 = arith.constant 3 : index
    %181 = memref.load %arg2[%c3_29] : memref<20xf32, #tpu.memory_space<smem>>
    %182 = vector.broadcast %181 : f32 to vector<1x8x128xf32>
    %183 = arith.addf %180, %182 : vector<1x8x128xf32>
    %184 = arith.mulf %183, %39 : vector<1x8x128xf32>
    %c2_30 = arith.constant 2 : index
    %185 = memref.load %arg2[%c2_30] : memref<20xf32, #tpu.memory_space<smem>>
    %186 = vector.broadcast %185 : f32 to vector<1x8x128xf32>
    %187 = arith.addf %184, %186 : vector<1x8x128xf32>
    %188 = arith.mulf %187, %39 : vector<1x8x128xf32>
    %c1_31 = arith.constant 1 : index
    %189 = memref.load %arg2[%c1_31] : memref<20xf32, #tpu.memory_space<smem>>
    %190 = vector.broadcast %189 : f32 to vector<1x8x128xf32>
    %191 = arith.addf %188, %190 : vector<1x8x128xf32>
    %192 = arith.mulf %191, %39 : vector<1x8x128xf32>
    %c0_32 = arith.constant 0 : index
    %193 = memref.load %arg2[%c0_32] : memref<20xf32, #tpu.memory_space<smem>>
    %194 = vector.broadcast %193 : f32 to vector<1x8x128xf32>
    %195 = arith.addf %192, %194 : vector<1x8x128xf32>
    %196 = arith.addf %177, %195 : vector<1x8x128xf32>
    %197 = arith.mulf %196, %35 : vector<1x8x128xf32>
    %cst_33 = arith.constant 0.000000e+00 : f32
    %198 = vector.broadcast %cst_33 : f32 to vector<2x8x128xf32>
    %199 = arith.subf %198, %118 : vector<2x8x128xf32>
    %c0_34 = arith.constant 0 : index
    %c0_35 = arith.constant 0 : index
    %c0_36 = arith.constant 0 : index
    %200 = vector.load %arg5[%c0_34, %c0_35, %c0_36] : memref<3x8x128xf32, #tpu.memory_space<vmem>>, vector<2x8x128xf32>
    tpu.vector_store %arg5[%c0_34, %c0_35, %c0_36], %199 {strides = array<i32>} : memref<3x8x128xf32, #tpu.memory_space<vmem>>, vector<2x8x128xf32>,
    %cst_37 = arith.constant 0.000000e+00 : f32
    %201 = vector.broadcast %cst_37 : f32 to vector<1x8x128xf32>
    %202 = arith.subf %201, %197 : vector<1x8x128xf32>
    %c2_38 = arith.constant 2 : index
    %c0_39 = arith.constant 0 : index
    %c0_40 = arith.constant 0 : index
    %203 = vector.load %arg5[%c2_38, %c0_39, %c0_40] : memref<3x8x128xf32, #tpu.memory_space<vmem>>, vector<1x8x128xf32>
    tpu.vector_store %arg5[%c2_38, %c0_39, %c0_40], %202 {strides = array<i32>} : memref<3x8x128xf32, #tpu.memory_space<vmem>>, vector<1x8x128xf32>,
    return
  }
  func.func @transform_0(%arg0: i32) -> i32 {
    %c0_i32 = arith.constant 0 : i32
    %c0_i32_0 = arith.constant 0 : i32
    return %c0_i32 : i32
  }
  func.func @transform_1(%arg0: i32) -> i32 {
    %c0_i32 = arith.constant 0 : i32
    %c0_i32_0 = arith.constant 0 : i32
    return %c0_i32 : i32
  }
  func.func @transform_2(%arg0: i32) -> i32 {
    %c0_i32 = arith.constant 0 : i32
    %c0_i32_0 = arith.constant 0 : i32
    return %c0_i32 : i32
  }
  func.func @transform_3(%arg0: i32) -> (i32, i32, i32) {
    %c0_i32 = arith.constant 0 : i32
    %c0_i32_0 = arith.constant 0 : i32
    %c0_i32_1 = arith.constant 0 : i32
    return %c0_i32, %arg0, %c0_i32_0 : i32, i32, i32
  }
  func.func @transform_4(%arg0: i32) -> (i32, i32, i32) {
    %c0_i32 = arith.constant 0 : i32
    %c0_i32_0 = arith.constant 0 : i32
    %c0_i32_1 = arith.constant 0 : i32
    return %c0_i32, %arg0, %c0_i32_0 : i32, i32, i32
  }
}

</mosaic_0001>

<llo_original>
// kernel: tpu_custom_call.1
$region0: #{tpu_custom_call.1}
  #allocation0 [shape = 'u32[]', space=smem, size = 0x4, offset = 0x4, fixed_abs, tag = 'smem constant byte address 0x4 - core index']
  #allocation1 [shape = 'u32[144,128]{1,0:T(1,128)}', space=vmem, size = 0x12000, scoped, tag = 'internal scratch']
  %s0 = inlined_call_operand.hbm [shape: f32[20], index: 0, kind: input, shape index: {}]
  %s1 = inlined_call_operand.vmem [shape: f32[20], index: 1, kind: input, shape index: {}]
  %s2 = inlined_call_operand.vmem [shape: f32[2], index: 2, kind: input, shape index: {}]
  %s3 = inlined_call_operand.hbm [shape: f32[4,32,128], index: 3, kind: input, shape index: {}]
  %s4 = inlined_call_operand.hbm [shape: f32[3,32,128], index: 4, kind: output, shape index: {}]
  %s5 = sld [smem:[#allocation0]]
  $region65: #{tpu_custom_call.1} parent=0
    _
  %s7 = ssub.s32 1, %s5
  %s8 = scalar_select 0, %s7, %s5
  $region1: #{tpu_custom_call.1} parent=0
    #allocation2 [shape = 'u8[512]{0}', space=smem, size = 0x200, scoped, tag = 'input window, operand 0, single buffered']
    #allocation3 [shape = 's32[2]{0}', space=sflag, size = 0x8, scoped, tag = 'scoped memory for tpu_custom_call.1']
    #allocation4 [shape = 's32[2]{0}', space=sflag, size = 0x8, scoped, tag = 'scoped memory for tpu_custom_call.1']
    #allocation5 [shape = 's32[2]{0}', space=sflag, size = 0x8, scoped, tag = 'scoped memory for tpu_custom_call.1']
    #allocation6 [shape = 's32[2]{0}', space=sflag, size = 0x8, scoped, tag = 'scoped memory for tpu_custom_call.1']
    #allocation7 [shape = 'u8[512]{0}', space=smem, size = 0x200, scoped, tag = 'input window, operand 1, single buffered']
    #allocation8 [shape = 'u8[512]{0}', space=smem, size = 0x200, scoped, tag = 'input window, operand 2, single buffered']
    #allocation9 [shape = 's32[1]{0}', space=sflag, size = 0x4, scoped, tag = 'scoped memory for tpu_custom_call.1']
    #allocation10 [shape = 'u8[32768]{0}', space=vmem, size = 0x8000, scoped, tag = 'input window, operand 3']
    #allocation11 [shape = 'u8[24576]{0}', space=vmem, size = 0x6000, scoped, tag = 'output window, operand 0']
    %9 = vsyncpa [#allocation5], 0
    %10 = vsyncpa [#allocation6], 0
    %11 = vsyncpa [#allocation9], 0
    %12 = vsyncpa [#allocation3], 0
    %s13 = scalar_lea.sflag [#allocation3], 1
    %14 = vsyncpa %s13, 0
    %15 = vsyncpa [#allocation4], 0
    %s16 = scalar_lea.sflag [#allocation4], 1
    %17 = vsyncpa %s16, 0
    loop: start=0, step=1, limit=6
    $region2: #{tpu_custom_call.1} parent=1 // loop_pre_header
      _
    $region3: #{tpu_custom_call.1} parent=1 // loop_header
      %s19 = sphi 0, %s23
      %p20 = scmp.ge.s32.totalorder %s19, 6
      %s27 = sphi 0, %s27
      %s29 = sphi 0, %s27
      %s30 = sphi 0, %s29
      %s44 = sphi 0, %s30
      %s48 = sphi 0, %s48
      %s50 = sphi 0, %s48
      %s51 = sphi 0, %s50
      %s65 = sphi 0, %s51
      %s69 = sphi 0, %s69
      %s71 = sphi 0, %s69
      %s72 = sphi 0, %s71
      %s86 = sphi 0, %s72
      %s92 = sphi 0, %s94
      %s95 = sphi 0, %s92
      %s96 = sphi 0, %s95
      %s112 = sphi 0, %s96
      %s118 = sphi 0, %s120
      %s121 = sphi 0, %s118
      %s122 = sphi 0, %s121
      %s138 = sphi 0, %s122
    $region4: #{tpu_custom_call.1} parent=1 // loop_header_branch
      %22 = sbr.rel (%p20) target = $region8
    $region5: #{tpu_custom_call.1} parent=1 // loop_body
      %s24 = ssub.s32 %s19, 1
      %s25 = ssub.s32 %s19, 2
      %s26 = sadd.s32 %s19, 1
      %s28 = sadd.s32 %s27, 1
      %p31 = scmp.eq.s32.totalorder %s19, 3
      %p32 = scmp.ne.s32.totalorder %s27, %s29
      %p33 = scmp.eq.s32.totalorder %s19, 0
      %p34 = por %p32, %p33
      %p35 = scmp.ne.s32.totalorder %s27, %s29
      %p36 = scmp.eq.s32.totalorder %s24, 3
      %p37 = por %p35, %p36
      %p38 = scmp.ne.s32.totalorder %s29, %s30
      %p39 = scmp.eq.s32.totalorder %s24, 0
      %p40 = por %p38, %p39
      %p41 = scmp.ne.s32.totalorder %s29, %s30
      %p42 = scmp.eq.s32.totalorder %s25, 3
      %p43 = por %p41, %p42
      %p45 = scmp.ne.s32.totalorder %s30, %s44
      %p46 = scmp.eq.s32.totalorder %s25, 0
      %p47 = por %p45, %p46
      %s49 = sadd.s32 %s48, 1
      %p52 = scmp.eq.s32.totalorder %s19, 3
      %p53 = scmp.ne.s32.totalorder %s48, %s50
      %p54 = scmp.eq.s32.totalorder %s19, 0
      %p55 = por %p53, %p54
      %p56 = scmp.ne.s32.totalorder %s48, %s50
      %p57 = scmp.eq.s32.totalorder %s24, 3
      %p58 = por %p56, %p57
      %p59 = scmp.ne.s32.totalorder %s50, %s51
      %p60 = scmp.eq.s32.totalorder %s24, 0
      %p61 = por %p59, %p60
      %p62 = scmp.ne.s32.totalorder %s50, %s51
      %p63 = scmp.eq.s32.totalorder %s25, 3
      %p64 = por %p62, %p63
      %p66 = scmp.ne.s32.totalorder %s51, %s65
      %p67 = scmp.eq.s32.totalorder %s25, 0
      %p68 = por %p66, %p67
      %s70 = sadd.s32 %s69, 1
      %p73 = scmp.eq.s32.totalorder %s19, 3
      %p74 = scmp.ne.s32.totalorder %s69, %s71
      %p75 = scmp.eq.s32.totalorder %s19, 0
      %p76 = por %p74, %p75
      %p77 = scmp.ne.s32.totalorder %s69, %s71
      %p78 = scmp.eq.s32.totalorder %s24, 3
      %p79 = por %p77, %p78
      %p80 = scmp.ne.s32.totalorder %s71, %s72
      %p81 = scmp.eq.s32.totalorder %s24, 0
      %p82 = por %p80, %p81
      %p83 = scmp.ne.s32.totalorder %s71, %s72
      %p84 = scmp.eq.s32.totalorder %s25, 3
      %p85 = por %p83, %p84
      %p87 = scmp.ne.s32.totalorder %s72, %s86
      %p88 = scmp.eq.s32.totalorder %s25, 0
      %p89 = por %p87, %p88
      %s90 = ssub.s32 %s19, %s26
      %p91 = scmp.eq.s32.totalorder %s90, 0
      %s93 = sadd.s32 %s92, 1
      %s94 = scalar_select %p91, %s92, %s93
      %p97 = pneg %p91
      %p98 = scmp.eq.s32.totalorder %s19, 3
      %p99 = por %p97, %p98
      %p100 = scmp.ne.s32.totalorder %s92, %s95
      %p101 = scmp.eq.s32.totalorder %s19, 0
      %p102 = por %p100, %p101
      %p103 = scmp.ne.s32.totalorder %s92, %s95
      %p104 = scmp.eq.s32.totalorder %s24, 3
      %p105 = por %p103, %p104
      %p106 = scmp.ne.s32.totalorder %s95, %s96
      %p107 = scmp.eq.s32.totalorder %s24, 0
      %p108 = por %p106, %p107
      %p109 = scmp.ne.s32.totalorder %s95, %s96
      %p110 = scmp.eq.s32.totalorder %s25, 3
      %p111 = por %p109, %p110
      %p113 = scmp.ne.s32.totalorder %s96, %s112
      %p114 = scmp.eq.s32.totalorder %s25, 0
      %p115 = por %p113, %p114
      %s116 = ssub.s32 %s19, %s26
      %p117 = scmp.eq.s32.totalorder %s116, 0
      %s119 = sadd.s32 %s118, 1
      %s120 = scalar_select %p117, %s118, %s119
      %p123 = pneg %p117
      %p124 = scmp.eq.s32.totalorder %s19, 3
      %p125 = por %p123, %p124
      %p126 = scmp.ne.s32.totalorder %s118, %s121
      %p127 = scmp.eq.s32.totalorder %s19, 0
      %p128 = por %p126, %p127
      %p129 = scmp.ne.s32.totalorder %s118, %s121
      %p130 = scmp.eq.s32.totalorder %s24, 3
      %p131 = por %p129, %p130
      %p132 = scmp.ne.s32.totalorder %s121, %s122
      %p133 = scmp.eq.s32.totalorder %s24, 0
      %p134 = por %p132, %p133
      %p135 = scmp.ne.s32.totalorder %s121, %s122
      %p136 = scmp.eq.s32.totalorder %s25, 3
      %p137 = por %p135, %p136
      %p139 = scmp.ne.s32.totalorder %s122, %s138
      %p140 = scmp.eq.s32.totalorder %s25, 0
      %p141 = por %p139, %p140
      %p142 = scmp.le.s32.totalorder 1, %s19
      %p143 = scmp.lt.s32.totalorder %s19, 5
      %p144 = pnand %p142, %p143
      %p145 = pneg %p144
      // Predicated region
      $region9: #{tpu_custom_call.1} parent=5 // pred_check
        _
      $region10: #{tpu_custom_call.1} parent=5 // pred_check_branch
        %147 = sbr.rel (%p144) target = $region12
      $region11: #{tpu_custom_call.1} parent=5 // pred_region
        %s148 = ssub.s32 %s19, 1
        // Predicated region
        $region13: #{tpu_custom_call.1} parent=11 // pred_check
          %p149 = pneg %p40
        $region14: #{tpu_custom_call.1} parent=11 // pred_check_branch
          %151 = sbr.rel (%p149) target = $region16
        $region15: #{tpu_custom_call.1} parent=11 // pred_region
          %s153 = ssub.s32 16, 16
          %154 = vsyncadd [#allocation5], %s153
          %157 = dma.hbm_to_smem %s0, 16, [#allocation2], [#allocation5]
        $region16: #{tpu_custom_call.1} parent=11 // pred_fallthru
          _
        // Predicated region
        $region17: #{tpu_custom_call.1} parent=11 // pred_check
          %p158 = pneg %p61
        $region18: #{tpu_custom_call.1} parent=11 // pred_check_branch
          %160 = sbr.rel (%p158) target = $region20
        $region19: #{tpu_custom_call.1} parent=11 // pred_region
          %s162 = ssub.s32 16, 16
          %163 = vsyncadd [#allocation6], %s162
          %s165 = sshll.u32 %s1, 4
          %s166 = int_to_ptr.vmem [resolvable:$true] %s165
          %168 = dma.vmem_to_smem %s166, 16, [#allocation7], [#allocation6]
        $region20: #{tpu_custom_call.1} parent=11 // pred_fallthru
          _
        // Predicated region
        $region21: #{tpu_custom_call.1} parent=11 // pred_check
          %p169 = pneg %p82
        $region22: #{tpu_custom_call.1} parent=11 // pred_check_branch
          %171 = sbr.rel (%p169) target = $region24
        $region23: #{tpu_custom_call.1} parent=11 // pred_region
          %s173 = ssub.s32 16, 16
          %174 = vsyncadd [#allocation9], %s173
          %s176 = sshll.u32 %s2, 4
          %s177 = int_to_ptr.vmem [resolvable:$true] %s176
          %179 = dma.vmem_to_smem %s177, 16, [#allocation8], [#allocation9]
        $region24: #{tpu_custom_call.1} parent=11 // pred_fallthru
          _
      $region12: #{tpu_custom_call.1} parent=5 // pred_fallthru
        _
      %p180 = scmp.lt.s32.totalorder %s19, 4
      // Predicated region
      $region25: #{tpu_custom_call.1} parent=5 // pred_check
        %p181 = pneg %p180
      $region26: #{tpu_custom_call.1} parent=5 // pred_check_branch
        %183 = sbr.rel (%p181) target = $region28
      $region27: #{tpu_custom_call.1} parent=5 // pred_region
        // Predicated region
        $region29: #{tpu_custom_call.1} parent=27 // pred_check
          %p184 = pneg %p102
        $region30: #{tpu_custom_call.1} parent=27 // pred_check_branch
          %186 = sbr.rel (%p184) target = $region32
        $region31: #{tpu_custom_call.1} parent=27 // pred_region
          %s187 = sand.u32 %s92, 1
          %s188 = scalar_lea.sflag [#allocation3], %s187
          %s189 = sand.u32 %s92, 1
          %s190 = smul.addr %s189, 32
          %s191 = scalar_lea.vmem [#allocation10], %s190
          %s193 = ssub.s32 512, 512
          %194 = vsyncadd %s188, %s193
          %s195 = smul.addr %s19, 128
          %s196 = scalar_lea.hbm %s3, %s195
          %s197 = sshll.u32 %s191, 4
          %s198 = int_to_ptr.vmem [resolvable:$true] %s197
          %203 = dma.hbm_to_vmem [thread:$0]  %s196, 512, %s198, %s188, 512, 128, 8
        $region32: #{tpu_custom_call.1} parent=27 // pred_fallthru
          _
      $region28: #{tpu_custom_call.1} parent=5 // pred_fallthru
        _
      %p204 = scmp.le.s32.totalorder 1, %s19
      %p205 = scmp.lt.s32.totalorder %s19, 5
      %p206 = pnand %p204, %p205
      %p207 = pneg %p206
      // Predicated region
      $region33: #{tpu_custom_call.1} parent=5 // pred_check
        _
      $region34: #{tpu_custom_call.1} parent=5 // pred_check_branch
        %209 = sbr.rel (%p206) target = $region36
      $region35: #{tpu_custom_call.1} parent=5 // pred_region
        %s210 = ssub.s32 %s19, 1
        // Predicated region
        $region37: #{tpu_custom_call.1} parent=35 // pred_check
          %p211 = pneg %p40
        $region38: #{tpu_custom_call.1} parent=35 // pred_check_branch
          %213 = sbr.rel (%p211) target = $region40
        $region39: #{tpu_custom_call.1} parent=35 // pred_region
          %214 = dma.done [#allocation5], 16
        $region40: #{tpu_custom_call.1} parent=35 // pred_fallthru
          _
        // Predicated region
        $region41: #{tpu_custom_call.1} parent=35 // pred_check
          %p215 = pneg %p61
        $region42: #{tpu_custom_call.1} parent=35 // pred_check_branch
          %217 = sbr.rel (%p215) target = $region44
        $region43: #{tpu_custom_call.1} parent=35 // pred_region
          %218 = dma.done [#allocation6], 16
        $region44: #{tpu_custom_call.1} parent=35 // pred_fallthru
          _
        // Predicated region
        $region45: #{tpu_custom_call.1} parent=35 // pred_check
          %p219 = pneg %p82
        $region46: #{tpu_custom_call.1} parent=35 // pred_check_branch
          %221 = sbr.rel (%p219) target = $region48
        $region47: #{tpu_custom_call.1} parent=35 // pred_region
          %222 = dma.done [#allocation9], 16
        $region48: #{tpu_custom_call.1} parent=35 // pred_fallthru
          _
        %s223 = sand.u32 %s95, 1
        %s224 = scalar_lea.sflag [#allocation3], %s223
        %s225 = sand.u32 %s95, 1
        %s226 = smul.addr %s225, 32
        %s227 = scalar_lea.vmem [#allocation10], %s226
        // Predicated region
        $region49: #{tpu_custom_call.1} parent=35 // pred_check
          %p228 = pneg %p108
        $region50: #{tpu_custom_call.1} parent=35 // pred_check_branch
          %230 = sbr.rel (%p228) target = $region52
        $region51: #{tpu_custom_call.1} parent=35 // pred_region
          %231 = dma.done %s224, 512
        $region52: #{tpu_custom_call.1} parent=35 // pred_fallthru
          _
        %232 = sfence
        %p233 = pneg %p40
        %p234 = pneg %p37
        %p235 = pneg %p61
        %p236 = pneg %p58
        %p237 = pneg %p82
        %p238 = pneg %p79
        %s239 = sand.u32 %s95, 1
        %s240 = scalar_lea.sflag [#allocation3], %s239
        %s241 = sand.u32 %s95, 1
        %s242 = smul.addr %s241, 32
        %s243 = scalar_lea.vmem [#allocation10], %s242
        %p244 = pneg %p108
        %p245 = pneg %p105
        %p246 = pneg %p134
        %p247 = pneg %p131
        %s248 = sand.u32 %s121, 1
        %s249 = scalar_lea.sflag [#allocation4], %s248
        %s250 = sand.u32 %s121, 1
        %s251 = smul.addr %s250, 24
        %s252 = scalar_lea.vmem [#allocation11], %s251
        %s253 = sld [smem:[#allocation8]]
        %s254 = sld [smem:[#allocation8 + $0x1]]
        %v255 = vld [vmem:[%s227] sm:$0xff]
        %v256 = vld [vmem:[%s227 + $0x8] sm:$0xff]
        %s257 = scalar_lea.vmem %s227, 16 [#allocation10]
        %v258 = vld [vmem:[%s257] sm:$0xff]
        %v259 = vld [vmem:[%s257 + $0x8] sm:$0xff]
        %v260 = vmul.f32 %v255, %v255
        %v261 = vmul.f32 %v256, %v256
        %v262 = vmul.f32 %v258, %v258
        %v263 = vmul.f32 %v259, %v259
        %v264 = vstv %s253
        %v265 = vmul.f32 %v264, %v262
        %v266 = vmul.f32 %v264, %v263
        %v267 = vstv %s254
        %v268 = vmul.f32 %v267, %v260
        %v269 = vmul.f32 %v267, %v261
        %v270 = vadd.f32 %v265, 1.0
        %v271 = vadd.f32 %v266, 1.0
        %v272 = vrcp.pop %v270
        %v273 = vrcp.pop %v271
        %v274 = vmul.f32 %v265, %v272
        %v275 = vmul.f32 %v266, %v273
        %v276 = vadd.f32 %v268, 1.0
        %v277 = vadd.f32 %v269, 1.0
        %v278 = vrcp.pop %v276
        %v279 = vrcp.pop %v277
        %v280 = vmul.f32 %v268, %v278
        %v281 = vmul.f32 %v269, %v279
        %v282 = vadd.f32 %v262, %v263
        %v283 = vmul.f32 %v282, 0.5
        %v284 = vadd.f32 %v260, %v261
        %v285 = vmul.f32 %v284, 0.5
        %v286 = vmul.f32 %v264, %v283
        %v287 = vmul.f32 %v267, %v285
        %v288 = vadd.f32 %v286, 1.0
        %v289 = vrcp.pop %v288
        %v290 = vmul.f32 %v286, %v289
        %v291 = vadd.f32 %v287, 1.0
        %v292 = vrcp.pop %v291
        %v293 = vmul.f32 %v287, %v292
        %s294 = sld [smem:[#allocation2 + $0x13]]
        %v295 = vstv %s294
        %v296 = vmul.f32 %v295, %v280
        %v297 = vmul.f32 %v295, %v281
        %s298 = sld [smem:[#allocation2 + $0x12]]
        %v299 = vstv %s298
        %v300 = vadd.f32 %v296, %v299
        %v301 = vadd.f32 %v297, %v299
        %v302 = vmul.f32 %v300, %v280
        %v303 = vmul.f32 %v301, %v281
        %s304 = sld [smem:[#allocation2 + $0x11]]
        %v305 = vstv %s304
        %v306 = vadd.f32 %v302, %v305
        %v307 = vadd.f32 %v303, %v305
        %v308 = vmul.f32 %v306, %v280
        %v309 = vmul.f32 %v307, %v281
        %s310 = sld [smem:[#allocation2 + $0x10]]
        %v311 = vstv %s310
        %v312 = vadd.f32 %v308, %v311
        %v313 = vadd.f32 %v309, %v311
        %v314 = vmul.f32 %v312, %v280
        %v315 = vmul.f32 %v313, %v281
        %s316 = sld [smem:[#allocation2 + $0xf]]
        %v317 = vstv %s316
        %v318 = vadd.f32 %v314, %v317
        %v319 = vadd.f32 %v315, %v317
        %v320 = vmul.f32 %v318, %v274
        %v321 = vmul.f32 %v319, %v275
        %s322 = sld [smem:[#allocation2 + $0xe]]
        %v323 = vstv %s322
        %v324 = vmul.f32 %v323, %v280
        %v325 = vmul.f32 %v323, %v281
        %s326 = sld [smem:[#allocation2 + $0xd]]
        %v327 = vstv %s326
        %v328 = vadd.f32 %v324, %v327
        %v329 = vadd.f32 %v325, %v327
        %v330 = vmul.f32 %v328, %v280
        %v331 = vmul.f32 %v329, %v281
        %s332 = sld [smem:[#allocation2 + $0xc]]
        %v333 = vstv %s332
        %v334 = vadd.f32 %v330, %v333
        %v335 = vadd.f32 %v331, %v333
        %v336 = vmul.f32 %v334, %v280
        %v337 = vmul.f32 %v335, %v281
        %s338 = sld [smem:[#allocation2 + $0xb]]
        %v339 = vstv %s338
        %v340 = vadd.f32 %v336, %v339
        %v341 = vadd.f32 %v337, %v339
        %v342 = vmul.f32 %v340, %v280
        %v343 = vmul.f32 %v341, %v281
        %s344 = sld [smem:[#allocation2 + $0xa]]
        %v345 = vstv %s344
        %v346 = vadd.f32 %v342, %v345
        %v347 = vadd.f32 %v343, %v345
        %v348 = vadd.f32 %v320, %v346
        %v349 = vadd.f32 %v321, %v347
        %v350 = vmul.f32 %v348, %v274
        %v351 = vmul.f32 %v349, %v275
        %s352 = sld [smem:[#allocation2 + $0x9]]
        %v353 = vstv %s352
        %v354 = vmul.f32 %v353, %v280
        %v355 = vmul.f32 %v353, %v281
        %s356 = sld [smem:[#allocation2 + $0x8]]
        %v357 = vstv %s356
        %v358 = vadd.f32 %v354, %v357
        %v359 = vadd.f32 %v355, %v357
        %v360 = vmul.f32 %v358, %v280
        %v361 = vmul.f32 %v359, %v281
        %s362 = sld [smem:[#allocation2 + $0x7]]
        %v363 = vstv %s362
        %v364 = vadd.f32 %v360, %v363
        %v365 = vadd.f32 %v361, %v363
        %v366 = vmul.f32 %v364, %v280
        %v367 = vmul.f32 %v365, %v281
        %s368 = sld [smem:[#allocation2 + $0x6]]
        %v369 = vstv %s368
        %v370 = vadd.f32 %v366, %v369
        %v371 = vadd.f32 %v367, %v369
        %v372 = vmul.f32 %v370, %v280
        %v373 = vmul.f32 %v371, %v281
        %s374 = sld [smem:[#allocation2 + $0x5]]
        %v375 = vstv %s374
        %v376 = vadd.f32 %v372, %v375
        %v377 = vadd.f32 %v373, %v375
        %v378 = vadd.f32 %v350, %v376
        %v379 = vadd.f32 %v351, %v377
        %v380 = vmul.f32 %v378, %v274
        %v381 = vmul.f32 %v379, %v275
        %s382 = sld [smem:[#allocation2 + $0x4]]
        %v383 = vstv %s382
        %v384 = vmul.f32 %v383, %v280
        %v385 = vmul.f32 %v383, %v281
        %s386 = sld [smem:[#allocation2 + $0x3]]
        %v387 = vstv %s386
        %v388 = vadd.f32 %v384, %v387
        %v389 = vadd.f32 %v385, %v387
        %v390 = vmul.f32 %v388, %v280
        %v391 = vmul.f32 %v389, %v281
        %s392 = sld [smem:[#allocation2 + $0x2]]
        %v393 = vstv %s392
        %v394 = vadd.f32 %v390, %v393
        %v395 = vadd.f32 %v391, %v393
        %v396 = vmul.f32 %v394, %v280
        %v397 = vmul.f32 %v395, %v281
        %s398 = sld [smem:[#allocation2 + $0x1]]
        %v399 = vstv %s398
        %v400 = vadd.f32 %v396, %v399
        %v401 = vadd.f32 %v397, %v399
        %v402 = vmul.f32 %v400, %v280
        %v403 = vmul.f32 %v401, %v281
        %s404 = sld [smem:[#allocation2]]
        %v405 = vstv %s404
        %v406 = vadd.f32 %v402, %v405
        %v407 = vadd.f32 %v403, %v405
        %v408 = vadd.f32 %v380, %v406
        %v409 = vadd.f32 %v381, %v407
        %v410 = vmul.f32 %v408, %v274
        %v411 = vmul.f32 %v409, %v275
        %s412 = sld [smem:[#allocation7 + $0x13]]
        %v413 = vstv %s412
        %v414 = vmul.f32 %v413, %v293
        %s415 = sld [smem:[#allocation7 + $0x12]]
        %v416 = vstv %s415
        %v417 = vadd.f32 %v414, %v416
        %v418 = vmul.f32 %v417, %v293
        %s419 = sld [smem:[#allocation7 + $0x11]]
        %v420 = vstv %s419
        %v421 = vadd.f32 %v418, %v420
        %v422 = vmul.f32 %v421, %v293
        %s423 = sld [smem:[#allocation7 + $0x10]]
        %v424 = vstv %s423
        %v425 = vadd.f32 %v422, %v424
        %v426 = vmul.f32 %v425, %v293
        %s427 = sld [smem:[#allocation7 + $0xf]]
        %v428 = vstv %s427
        %v429 = vadd.f32 %v426, %v428
        %v430 = vmul.f32 %v429, %v290
        %s431 = sld [smem:[#allocation7 + $0xe]]
        %v432 = vstv %s431
        %v433 = vmul.f32 %v432, %v293
        %s434 = sld [smem:[#allocation7 + $0xd]]
        %v435 = vstv %s434
        %v436 = vadd.f32 %v433, %v435
        %v437 = vmul.f32 %v436, %v293
        %s438 = sld [smem:[#allocation7 + $0xc]]
        %v439 = vstv %s438
        %v440 = vadd.f32 %v437, %v439
        %v441 = vmul.f32 %v440, %v293
        %s442 = sld [smem:[#allocation7 + $0xb]]
        %v443 = vstv %s442
        %v444 = vadd.f32 %v441, %v443
        %v445 = vmul.f32 %v444, %v293
        %s446 = sld [smem:[#allocation7 + $0xa]]
        %v447 = vstv %s446
        %v448 = vadd.f32 %v445, %v447
        %v449 = vadd.f32 %v430, %v448
        %v450 = vmul.f32 %v449, %v290
        %s451 = sld [smem:[#allocation7 + $0x9]]
        %v452 = vstv %s451
        %v453 = vmul.f32 %v452, %v293
        %s454 = sld [smem:[#allocation7 + $0x8]]
        %v455 = vstv %s454
        %v456 = vadd.f32 %v453, %v455
        %v457 = vmul.f32 %v456, %v293
        %s458 = sld [smem:[#allocation7 + $0x7]]
        %v459 = vstv %s458
        %v460 = vadd.f32 %v457, %v459
        %v461 = vmul.f32 %v460, %v293
        %s462 = sld [smem:[#allocation7 + $0x6]]
        %v463 = vstv %s462
        %v464 = vadd.f32 %v461, %v463
        %v465 = vmul.f32 %v464, %v293
        %s466 = sld [smem:[#allocation7 + $0x5]]
        %v467 = vstv %s466
        %v468 = vadd.f32 %v465, %v467
        %v469 = vadd.f32 %v450, %v468
        %v470 = vmul.f32 %v469, %v290
        %s471 = sld [smem:[#allocation7 + $0x4]]
        %v472 = vstv %s471
        %v473 = vmul.f32 %v472, %v293
        %s474 = sld [smem:[#allocation7 + $0x3]]
        %v475 = vstv %s474
        %v476 = vadd.f32 %v473, %v475
        %v477 = vmul.f32 %v476, %v293
        %s478 = sld [smem:[#allocation7 + $0x2]]
        %v479 = vstv %s478
        %v480 = vadd.f32 %v477, %v479
        %v481 = vmul.f32 %v480, %v293
        %s482 = sld [smem:[#allocation7 + $0x1]]
        %v483 = vstv %s482
        %v484 = vadd.f32 %v481, %v483
        %v485 = vmul.f32 %v484, %v293
        %s486 = sld [smem:[#allocation7]]
        %v487 = vstv %s486
        %v488 = vadd.f32 %v485, %v487
        %v489 = vadd.f32 %v470, %v488
        %v490 = vmul.f32 %v489, %v290
        %v491 = vsub.f32 0.0, %v410
        %v492 = vsub.f32 0.0, %v411
        %493 = vst [vmem:[%s252] sm:$0xff] %v491
        %494 = vst [vmem:[%s252 + $0x8] sm:$0xff] %v492
        %v495 = vsub.f32 0.0, %v490
        %s496 = scalar_lea.vmem %s252, 16 [#allocation11]
        %497 = vst [vmem:[%s496] sm:$0xff] %v495
        %s498 = sand.u32 %s121, 1
        %s499 = scalar_lea.sflag [#allocation4], %s498
        %s500 = sand.u32 %s121, 1
        %s501 = smul.addr %s500, 24
        %s502 = scalar_lea.vmem [#allocation11], %s501
        // Predicated region
        $region53: #{tpu_custom_call.1} parent=35 // pred_check
          %p503 = pneg %p131
        $region54: #{tpu_custom_call.1} parent=35 // pred_check_branch
          %505 = sbr.rel (%p503) target = $region56
        $region55: #{tpu_custom_call.1} parent=35 // pred_region
          %s507 = ssub.s32 384, 384
          %508 = vsyncadd %s499, %s507
          %s509 = smul.addr %s24, 128
          %s510 = scalar_lea.hbm %s4, %s509
          %s511 = sshll.u32 %s502, 4
          %s512 = int_to_ptr.vmem [resolvable:$true] %s511
          %517 = dma.vmem_to_hbm [thread:$0]  %s512, 384, %s510, %s499, 128, 512, 8
        $region56: #{tpu_custom_call.1} parent=35 // pred_fallthru
          _
      $region36: #{tpu_custom_call.1} parent=5 // pred_fallthru
        _
      %p518 = scmp.le.s32.totalorder 2, %s19
      // Predicated region
      $region57: #{tpu_custom_call.1} parent=5 // pred_check
        %p519 = pneg %p518
      $region58: #{tpu_custom_call.1} parent=5 // pred_check_branch
        %521 = sbr.rel (%p519) target = $region60
      $region59: #{tpu_custom_call.1} parent=5 // pred_region
        %s522 = ssub.s32 %s19, 2
        // Predicated region
        $region61: #{tpu_custom_call.1} parent=59 // pred_check
          %p523 = pneg %p137
        $region62: #{tpu_custom_call.1} parent=59 // pred_check_branch
          %525 = sbr.rel (%p523) target = $region64
        $region63: #{tpu_custom_call.1} parent=59 // pred_region
          %s526 = sand.u32 %s122, 1
          %s527 = scalar_lea.sflag [#allocation4], %s526
          %s528 = sand.u32 %s122, 1
          %s529 = smul.addr %s528, 24
          %s530 = scalar_lea.vmem [#allocation11], %s529
          %531 = dma.done %s527, 384
        $region64: #{tpu_custom_call.1} parent=59 // pred_fallthru
          _
      $region60: #{tpu_custom_call.1} parent=5 // pred_fallthru
        _
    $region6: #{tpu_custom_call.1} parent=1 // loop_footer
      %s23 = sadd.s32 1, %s19
    $region7: #{tpu_custom_call.1} parent=1 // loop_footer_branch
      %18 = sbr.rel target = $region3
    $region8: #{tpu_custom_call.1} parent=1 // loop_exit
      _
    %532 = vsyncpa [#allocation3], 1
    %s533 = scalar_lea.sflag [#allocation3], 1
    %534 = vsyncpa %s533, 1
    %535 = vsyncpa [#allocation4], 1
    %s536 = scalar_lea.sflag [#allocation4], 1
    %537 = vsyncpa %s536, 1
    %538 = vsyncpa [#allocation5], 1
    %s539 = scalar_lea.sflag [#allocation5], 1
    %540 = vsyncpa %s539, 1
    %541 = vsyncpa [#allocation6], 1
    %s542 = scalar_lea.sflag [#allocation6], 1
    %543 = vsyncpa %s542, 1
    %544 = vsyncpa [#allocation9], 1

</llo_original>
